<compile_context>
chip_gen: v7x
topology: tpu7x:2x2x1
jax: 0.10.0
libtpu: 0.0.40
codegen_flags: <defaults>
</compile_context>

<pallas_src>
import functools

import jax
import jax.numpy as jnp
from jax import lax
from jax.experimental import pallas as pl
from jax.experimental.pallas import tpu as pltpu

EPS = 1e-3


def _dwconv_bn_kernel(x_ref, p_ref, m_ref, o_ref, *, width, eps):
    # x_ref : (N, CB, H*W)  input block (full batch + spatial for CB channels)
    # p_ref : (11, CB, 1)   rows 0..8 = taps (kh*3+kw), 9 = gamma, 10 = beta
    # m_ref : (2, H*W)      column masks: row0 zero at col==0, row1 zero at col==W-1
    # o_ref : (N, CB, H*W)
    n, cb, hw = x_ref.shape
    x = x_ref[...]
    params = p_ref[...]                  # (11, CB, 1), broadcasts on lanes
    cmask = m_ref[...]                   # (2, HW)

    # Row-boundary masks (kill the wrap-around of the +/-W vertical rolls),
    # built in-kernel from a lane iota: a couple of VALU compares per step.
    pos = lax.broadcasted_iota(jnp.int32, (1, 1, hw), 2)
    not_top = (pos >= width).astype(x.dtype)        # zero first W lanes (h == 0)
    not_bot = (pos < hw - width).astype(x.dtype)    # zero last  W lanes (h == H-1)

    # Horizontal neighbours, shared across the 3 kernel rows (2 XLU rolls).
    # pltpu.roll follows jnp.roll: roll(y, s)[p] = y[(p - s) mod HW].
    # The pre-applied column mask zeroes both the true row edge AND the single
    # wrapped lane, so no post-roll mask is needed for the horizontal taps.
    xr = pltpu.roll(x * cmask[0:1, :], shift=hw - 1, axis=2)   # x[p+1] (kw==2)
    xl = pltpu.roll(x * cmask[1:2, :], shift=1, axis=2)        # x[p-1] (kw==0)

    # Per-kernel-row horizontal combination, then 2 vertical rolls.
    rows = []
    for kh in range(3):
        rows.append(params[3 * kh + 0] * xl
                    + params[3 * kh + 1] * x
                    + params[3 * kh + 2] * xr)
    acc = (rows[1]
           + not_top * pltpu.roll(rows[0], shift=width, axis=2)       # row h-1
           + not_bot * pltpu.roll(rows[2], shift=hw - width, axis=2)) # row h+1

    # Training-mode BatchNorm over (N, H, W) per channel.  This block holds the
    # full batch for its channels, so tile statistics ARE the batch statistics.
    # Single pass: var = E[y^2] - E[y]^2 (clamped), centering folded into the
    # affine so no centered tile is ever stored/reloaded.
    inv_cnt = 1.0 / float(n * hw)
    s1 = jnp.sum(jnp.sum(acc, axis=2, keepdims=True), axis=0, keepdims=True)
    s2 = jnp.sum(jnp.sum(acc * acc, axis=2, keepdims=True), axis=0, keepdims=True)
    mean = s1 * inv_cnt                                     # (1, CB, 1)
    var = jnp.maximum(s2 * inv_cnt - mean * mean, 0.0)      # (1, CB, 1)
    scale = params[9] * lax.rsqrt(var + eps)                # gamma / sqrt(var+eps)
    shift = params[10] - mean * scale                       # beta - mean*scale
    o_ref[...] = acc * scale + shift


def _num_tensorcores():
    """Best-effort TensorCore count per device (for balanced grid sharding)."""
    try:
        return max(1, int(getattr(jax.devices()[0], "num_cores", 1)))
    except Exception:  # pragma: no cover
        return 1


def _pick_channel_block(c, n, hw, n_cores=1, bytes_budget=2 << 20):
    """Largest channel block (multiple of 8, divides C, tile <= ~2 MiB),
    preferring >=2 grid steps (pipelining) and, when multiple TensorCores are
    visible, a grid count divisible by the core count (balanced sharding)."""
    cands = [d for d in range(8, min(c, 128) + 1, 8) if c % d == 0]
    if not cands:
        return c                          # tiny C: whole-array block is legal
    fitting = [d for d in cands if n * d * hw * 4 <= bytes_budget]
    if not fitting:
        return cands[0]
    multi = [d for d in fitting if c // d >= 2]
    if not multi:
        return max(fitting)
    if n_cores > 1:
        balanced = [d for d in multi if (c // d) % n_cores == 0]
        if balanced:
            return max(balanced)
    return max(multi)


def dwconv_bn(x_nchw, w_dw, gamma, beta):
    """x_nchw: (N, C, H, W); w_dw: (C, 1, 3, 3); gamma, beta: (C,)."""
    n, c, h, w = x_nchw.shape
    hw = h * w
    cb = _pick_channel_block(c, n, hw, n_cores=_num_tensorcores())
    grid = (c // cb,)

    # (N, C, H, W) -> (N, C, H*W): metadata reshape only.
    x3 = x_nchw.reshape(n, c, hw).astype(jnp.float32)

    # Pack per-channel constants into ONE (11, C, 1) input:
    # rows 0..8 = depthwise taps (tap index kh*3+kw), row 9 = gamma, row 10 = beta.
    w9 = jnp.transpose(w_dw.reshape(c, 9).astype(jnp.float32), (1, 0))   # (9, C)
    params = jnp.concatenate(
        [w9,
         gamma.reshape(1, c).astype(jnp.float32),
         beta.reshape(1, c).astype(jnp.float32)], axis=0).reshape(11, c, 1)

    # Column-edge masks over the flattened spatial index (tiny, built once;
    # the row masks are generated inside the kernel from an iota).
    col = jnp.arange(hw, dtype=jnp.int32) % w
    cmask = jnp.stack([(col != 0).astype(jnp.float32),
                       (col != (w - 1)).astype(jnp.float32)], axis=0)    # (2, HW)

    kernel = functools.partial(_dwconv_bn_kernel, width=w, eps=EPS)

    # Explicit VMEM budget: double-buffered in/out tiles + a handful of
    # tile-sized temporaries (rolled copies, row combos, acc), capped at 64 MiB.
    tile_bytes = n * cb * hw * 4
    vmem_limit = int(min(64 << 20, max(32 << 20, 14 * tile_bytes)))

    out3 = pl.pallas_call(
        kernel,
        out_shape=jax.ShapeDtypeStruct((n, c, hw), jnp.float32),
        grid=grid,
        in_specs=[
            pl.BlockSpec((n, cb, hw), lambda i: (0, i, 0)),   # input channel block
            pl.BlockSpec((11, cb, 1), lambda i: (0, i, 0)),   # packed taps/gamma/beta
            pl.BlockSpec((2, hw), lambda i: (0, 0)),          # column masks (shared)
        ],
        out_specs=pl.BlockSpec((n, cb, hw), lambda i: (0, i, 0)),
        compiler_params=pltpu.CompilerParams(
            dimension_semantics=("parallel",),
            vmem_limit_bytes=vmem_limit),
    )(x3, params, cmask)

    return out3.reshape(n, c, h, w)


def reference(x_nchw, w_dw, gamma, beta):
    """Pure-JAX reference: depthwise conv + training-mode BN."""
    n, c, h, w = x_nchw.shape
    y = lax.conv_general_dilated(
        x_nchw.astype(jnp.float32), w_dw.astype(jnp.float32),
        window_strides=(1, 1), padding=((1, 1), (1, 1)),
        dimension_numbers=("NCHW", "OIHW", "NCHW"),
        feature_group_count=c)
    mean = jnp.mean(y, axis=(0, 2, 3), keepdims=True)
    var = jnp.mean((y - mean) ** 2, axis=(0, 2, 3), keepdims=True)
    yhat = (y - mean) / jnp.sqrt(var + EPS)
    return yhat * gamma.reshape(1, c, 1, 1) + beta.reshape(1, c, 1, 1)


if __name__ == "__main__":
    # Small shapes consistent with the module (original: 1x288x56x56).
    N, C, H, W = 2, 32, 16, 16

    key = jax.random.PRNGKey(0)
    kx, kw, kg, kb = jax.random.split(key, 4)

    x = jax.random.normal(kx, (N, C, H, W), dtype=jnp.float32)        # NCHW input
    w_dw = jax.random.normal(kw, (C, 1, 3, 3), dtype=jnp.float32) * 0.1
    gamma = 1.0 + 0.1 * jax.random.normal(kg, (C,), dtype=jnp.float32)
    beta = 0.1 * jax.random.normal(kb, (C,), dtype=jnp.float32)

    out = dwconv_bn(x, w_dw, gamma, beta)
    out = jax.block_until_ready(out)

    ref = reference(x, w_dw, gamma, beta)
    assert out.shape == (N, C, H, W)
    assert jnp.max(jnp.abs(out - ref)) < 1e-4

    # TODO(synk): BN running_mean/running_var (momentum=0.01) buffer updates are
    # PyTorch-module state mutation, not part of the returned tensor; they are
    # not emitted by this forward kernel.
    print("KERNEL_OK")
</pallas_src>

<mosaic_0001>
module attributes {stable_mosaic.version = 11 : i64} {
  func.func @_dwconv_bn_kernel(%arg0: i32, %arg1: memref<2x16x256xf32, #tpu.memory_space<vmem>>, %arg2: memref<11x16x1xf32, #tpu.memory_space<vmem>>, %arg3: memref<2x256xf32, #tpu.memory_space<vmem>>, %arg4: memref<2x16x256xf32, #tpu.memory_space<vmem>>) attributes {dimension_semantics = [#tpu.dimension_semantics<parallel>], iteration_bounds = array<i64: 2>, scalar_prefetch = 0 : i64, scratch_operands = 0 : i64, tpu.core_type = #tpu.core_type<tc>, window_params = [{transform_indices = @transform_0, window_bounds = array<i64: 2, 16, 256>}, {transform_indices = @transform_1, window_bounds = array<i64: 11, 16, 1>}, {pipeline_mode = #tpu.pipeline_mode<synchronous>, transform_indices = @transform_2, window_bounds = array<i64: 2, 256>}, {transform_indices = @transform_3, window_bounds = array<i64: 2, 16, 256>}]} {
    %c0 = arith.constant 0 : index
    %c0_0 = arith.constant 0 : index
    %c0_1 = arith.constant 0 : index
    %0 = vector.load %arg1[%c0, %c0_0, %c0_1] : memref<2x16x256xf32, #tpu.memory_space<vmem>>, vector<2x16x256xf32>
    %c0_2 = arith.constant 0 : index
    %c0_3 = arith.constant 0 : index
    %c0_4 = arith.constant 0 : index
    %1 = vector.load %arg2[%c0_2, %c0_3, %c0_4] : memref<11x16x1xf32, #tpu.memory_space<vmem>>, vector<11x16x1xf32>
    %c0_5 = arith.constant 0 : index
    %c0_6 = arith.constant 0 : index
    %2 = vector.load %arg3[%c0_5, %c0_6] : memref<2x256xf32, #tpu.memory_space<vmem>>, vector<2x256xf32>
    %3 = tpu.iota {dimensions = array<i32: 2>} : vector<1x1x256xi32>
    %c16_i32 = arith.constant 16 : i32
    %4 = vector.broadcast %c16_i32 : i32 to vector<1x1x256xi32>
    %5 = arith.cmpi sge, %3, %4 : vector<1x1x256xi32>
    %6 = arith.extui %5 : vector<1x1x256xi1> to vector<1x1x256xi32>
    %7 = arith.sitofp %6 : vector<1x1x256xi32> to vector<1x1x256xf32>
    %c240_i32 = arith.constant 240 : i32
    %8 = vector.broadcast %c240_i32 : i32 to vector<1x1x256xi32>
    %9 = arith.cmpi slt, %3, %8 : vector<1x1x256xi32>
    %10 = arith.extui %9 : vector<1x1x256xi1> to vector<1x1x256xi32>
    %11 = arith.sitofp %10 : vector<1x1x256xi32> to vector<1x1x256xf32>
    %12 = vector.extract_strided_slice %2 {offsets = [0, 0], sizes = [1, 256], strides = [1, 1]} : vector<2x256xf32> to vector<1x256xf32>
    %13 = vector.shape_cast %12 : vector<1x256xf32> to vector<1x1x256xf32>
    %14 = vector.broadcast %13 : vector<1x1x256xf32> to vector<2x16x256xf32>
    %15 = arith.mulf %0, %14 : vector<2x16x256xf32>
    %c255_i32 = arith.constant 255 : i32
    %16 = tpu.dynamic_rotate %15 by %c255_i32 dim 2 : vector<2x16x256xf32>, i32 -> vector<2x16x256xf32>
    %17 = vector.extract_strided_slice %2 {offsets = [1, 0], sizes = [1, 256], strides = [1, 1]} : vector<2x256xf32> to vector<1x256xf32>
    %18 = vector.shape_cast %17 : vector<1x256xf32> to vector<1x1x256xf32>
    %19 = vector.broadcast %18 : vector<1x1x256xf32> to vector<2x16x256xf32>
    %20 = arith.mulf %0, %19 : vector<2x16x256xf32>
    %c1_i32 = arith.constant 1 : i32
    %21 = tpu.dynamic_rotate %20 by %c1_i32 dim 2 : vector<2x16x256xf32>, i32 -> vector<2x16x256xf32>
    %22 = vector.extract_strided_slice %1 {offsets = [0, 0, 0], sizes = [1, 16, 1], strides = [1, 1, 1]} : vector<11x16x1xf32> to vector<1x16x1xf32>
    %23 = vector.shape_cast %22 : vector<1x16x1xf32> to vector<16x1xf32>
    %24 = vector.shape_cast %23 : vector<16x1xf32> to vector<1x16x1xf32>
    %25 = vector.broadcast %24 : vector<1x16x1xf32> to vector<2x16x256xf32>
    %26 = arith.mulf %25, %21 : vector<2x16x256xf32>
    %27 = vector.extract_strided_slice %1 {offsets = [1, 0, 0], sizes = [1, 16, 1], strides = [1, 1, 1]} : vector<11x16x1xf32> to vector<1x16x1xf32>
    %28 = vector.shape_cast %27 : vector<1x16x1xf32> to vector<16x1xf32>
    %29 = vector.shape_cast %28 : vector<16x1xf32> to vector<1x16x1xf32>
    %30 = vector.broadcast %29 : vector<1x16x1xf32> to vector<2x16x256xf32>
    %31 = arith.mulf %30, %0 : vector<2x16x256xf32>
    %32 = arith.addf %26, %31 : vector<2x16x256xf32>
    %33 = vector.extract_strided_slice %1 {offsets = [2, 0, 0], sizes = [1, 16, 1], strides = [1, 1, 1]} : vector<11x16x1xf32> to vector<1x16x1xf32>
    %34 = vector.shape_cast %33 : vector<1x16x1xf32> to vector<16x1xf32>
    %35 = vector.shape_cast %34 : vector<16x1xf32> to vector<1x16x1xf32>
    %36 = vector.broadcast %35 : vector<1x16x1xf32> to vector<2x16x256xf32>
    %37 = arith.mulf %36, %16 : vector<2x16x256xf32>
    %38 = arith.addf %32, %37 : vector<2x16x256xf32>
    %39 = vector.extract_strided_slice %1 {offsets = [3, 0, 0], sizes = [1, 16, 1], strides = [1, 1, 1]} : vector<11x16x1xf32> to vector<1x16x1xf32>
    %40 = vector.shape_cast %39 : vector<1x16x1xf32> to vector<16x1xf32>
    %41 = vector.shape_cast %40 : vector<16x1xf32> to vector<1x16x1xf32>
    %42 = vector.broadcast %41 : vector<1x16x1xf32> to vector<2x16x256xf32>
    %43 = arith.mulf %42, %21 : vector<2x16x256xf32>
    %44 = vector.extract_strided_slice %1 {offsets = [4, 0, 0], sizes = [1, 16, 1], strides = [1, 1, 1]} : vector<11x16x1xf32> to vector<1x16x1xf32>
    %45 = vector.shape_cast %44 : vector<1x16x1xf32> to vector<16x1xf32>
    %46 = vector.shape_cast %45 : vector<16x1xf32> to vector<1x16x1xf32>
    %47 = vector.broadcast %46 : vector<1x16x1xf32> to vector<2x16x256xf32>
    %48 = arith.mulf %47, %0 : vector<2x16x256xf32>
    %49 = arith.addf %43, %48 : vector<2x16x256xf32>
    %50 = vector.extract_strided_slice %1 {offsets = [5, 0, 0], sizes = [1, 16, 1], strides = [1, 1, 1]} : vector<11x16x1xf32> to vector<1x16x1xf32>
    %51 = vector.shape_cast %50 : vector<1x16x1xf32> to vector<16x1xf32>
    %52 = vector.shape_cast %51 : vector<16x1xf32> to vector<1x16x1xf32>
    %53 = vector.broadcast %52 : vector<1x16x1xf32> to vector<2x16x256xf32>
    %54 = arith.mulf %53, %16 : vector<2x16x256xf32>
    %55 = arith.addf %49, %54 : vector<2x16x256xf32>
    %56 = vector.extract_strided_slice %1 {offsets = [6, 0, 0], sizes = [1, 16, 1], strides = [1, 1, 1]} : vector<11x16x1xf32> to vector<1x16x1xf32>
    %57 = vector.shape_cast %56 : vector<1x16x1xf32> to vector<16x1xf32>
    %58 = vector.shape_cast %57 : vector<16x1xf32> to vector<1x16x1xf32>
    %59 = vector.broadcast %58 : vector<1x16x1xf32> to vector<2x16x256xf32>
    %60 = arith.mulf %59, %21 : vector<2x16x256xf32>
    %61 = vector.extract_strided_slice %1 {offsets = [7, 0, 0], sizes = [1, 16, 1], strides = [1, 1, 1]} : vector<11x16x1xf32> to vector<1x16x1xf32>
    %62 = vector.shape_cast %61 : vector<1x16x1xf32> to vector<16x1xf32>
    %63 = vector.shape_cast %62 : vector<16x1xf32> to vector<1x16x1xf32>
    %64 = vector.broadcast %63 : vector<1x16x1xf32> to vector<2x16x256xf32>
    %65 = arith.mulf %64, %0 : vector<2x16x256xf32>
    %66 = arith.addf %60, %65 : vector<2x16x256xf32>
    %67 = vector.extract_strided_slice %1 {offsets = [8, 0, 0], sizes = [1, 16, 1], strides = [1, 1, 1]} : vector<11x16x1xf32> to vector<1x16x1xf32>
    %68 = vector.shape_cast %67 : vector<1x16x1xf32> to vector<16x1xf32>
    %69 = vector.shape_cast %68 : vector<16x1xf32> to vector<1x16x1xf32>
    %70 = vector.broadcast %69 : vector<1x16x1xf32> to vector<2x16x256xf32>
    %71 = arith.mulf %70, %16 : vector<2x16x256xf32>
    %72 = arith.addf %66, %71 : vector<2x16x256xf32>
    %c16_i32_7 = arith.constant 16 : i32
    %73 = tpu.dynamic_rotate %38 by %c16_i32_7 dim 2 : vector<2x16x256xf32>, i32 -> vector<2x16x256xf32>
    %74 = vector.broadcast %7 : vector<1x1x256xf32> to vector<2x16x256xf32>
    %75 = arith.mulf %74, %73 : vector<2x16x256xf32>
    %76 = arith.addf %55, %75 : vector<2x16x256xf32>
    %c240_i32_8 = arith.constant 240 : i32
    %77 = tpu.dynamic_rotate %72 by %c240_i32_8 dim 2 : vector<2x16x256xf32>, i32 -> vector<2x16x256xf32>
    %78 = vector.broadcast %11 : vector<1x1x256xf32> to vector<2x16x256xf32>
    %79 = arith.mulf %78, %77 : vector<2x16x256xf32>
    %80 = arith.addf %76, %79 : vector<2x16x256xf32>
    %cst = arith.constant dense<0.000000e+00> : vector<2x16xf32>
    %81 = vector.multi_reduction <add>, %80, %cst [2] : vector<2x16x256xf32> to vector<2x16xf32>
    %82 = vector.shape_cast %81 : vector<2x16xf32> to vector<2x16x1xf32>
    %cst_9 = arith.constant dense<0.000000e+00> : vector<16x1xf32>
    %83 = vector.multi_reduction <add>, %82, %cst_9 [0] : vector<2x16x1xf32> to vector<16x1xf32>
    %84 = vector.shape_cast %83 : vector<16x1xf32> to vector<1x16x1xf32>
    %85 = arith.mulf %80, %80 : vector<2x16x256xf32>
    %cst_10 = arith.constant dense<0.000000e+00> : vector<2x16xf32>
    %86 = vector.multi_reduction <add>, %85, %cst_10 [2] : vector<2x16x256xf32> to vector<2x16xf32>
    %87 = vector.shape_cast %86 : vector<2x16xf32> to vector<2x16x1xf32>
    %cst_11 = arith.constant dense<0.000000e+00> : vector<16x1xf32>
    %88 = vector.multi_reduction <add>, %87, %cst_11 [0] : vector<2x16x1xf32> to vector<16x1xf32>
    %89 = vector.shape_cast %88 : vector<16x1xf32> to vector<1x16x1xf32>
    %cst_12 = arith.constant 0.001953125 : f32
    %90 = vector.broadcast %cst_12 : f32 to vector<1x16x1xf32>
    %91 = arith.mulf %84, %90 : vector<1x16x1xf32>
    %cst_13 = arith.constant 0.001953125 : f32
    %92 = vector.broadcast %cst_13 : f32 to vector<1x16x1xf32>
    %93 = arith.mulf %89, %92 : vector<1x16x1xf32>
    %94 = arith.mulf %91, %91 : vector<1x16x1xf32>
    %95 = arith.subf %93, %94 : vector<1x16x1xf32>
    %cst_14 = arith.constant 0.000000e+00 : f32
    %96 = vector.broadcast %cst_14 : f32 to vector<1x16x1xf32>
    %97 = arith.maximumf %95, %96 : vector<1x16x1xf32>
    %98 = vector.extract_strided_slice %1 {offsets = [9, 0, 0], sizes = [1, 16, 1], strides = [1, 1, 1]} : vector<11x16x1xf32> to vector<1x16x1xf32>
    %99 = vector.shape_cast %98 : vector<1x16x1xf32> to vector<16x1xf32>
    %cst_15 = arith.constant 1.000000e-03 : f32
    %100 = vector.broadcast %cst_15 : f32 to vector<1x16x1xf32>
    %101 = arith.addf %97, %100 : vector<1x16x1xf32>
    %102 = math.rsqrt %101 : vector<1x16x1xf32>
    %103 = vector.shape_cast %99 : vector<16x1xf32> to vector<1x16x1xf32>
    %104 = arith.mulf %103, %102 : vector<1x16x1xf32>
    %105 = vector.extract_strided_slice %1 {offsets = [10, 0, 0], sizes = [1, 16, 1], strides = [1, 1, 1]} : vector<11x16x1xf32> to vector<1x16x1xf32>
    %106 = vector.shape_cast %105 : vector<1x16x1xf32> to vector<16x1xf32>
    %107 = arith.mulf %91, %104 : vector<1x16x1xf32>
    %108 = vector.shape_cast %106 : vector<16x1xf32> to vector<1x16x1xf32>
    %109 = arith.subf %108, %107 : vector<1x16x1xf32>
    %110 = vector.broadcast %104 : vector<1x16x1xf32> to vector<2x16x256xf32>
    %111 = arith.mulf %80, %110 : vector<2x16x256xf32>
    %112 = vector.broadcast %109 : vector<1x16x1xf32> to vector<2x16x256xf32>
    %113 = arith.addf %111, %112 : vector<2x16x256xf32>
    %c0_16 = arith.constant 0 : index
    %c0_17 = arith.constant 0 : index
    %c0_18 = arith.constant 0 : index
    %114 = vector.load %arg4[%c0_16, %c0_17, %c0_18] : memref<2x16x256xf32, #tpu.memory_space<vmem>>, vector<2x16x256xf32>
    tpu.vector_store %arg4[%c0_16, %c0_17, %c0_18], %113 {strides = array<i32>} : memref<2x16x256xf32, #tpu.memory_space<vmem>>, vector<2x16x256xf32>,
    return
  }
  func.func @transform_0(%arg0: i32) -> (i32, i32, i32) {
    %c0_i32 = arith.constant 0 : i32
    %c0_i32_0 = arith.constant 0 : i32
    %c0_i32_1 = arith.constant 0 : i32
    return %c0_i32, %arg0, %c0_i32_0 : i32, i32, i32
  }
  func.func @transform_1(%arg0: i32) -> (i32, i32, i32) {
    %c0_i32 = arith.constant 0 : i32
    %c0_i32_0 = arith.constant 0 : i32
    %c0_i32_1 = arith.constant 0 : i32
    return %c0_i32, %arg0, %c0_i32_0 : i32, i32, i32
  }
  func.func @transform_2(%arg0: i32) -> (i32, i32) {
    %c0_i32 = arith.constant 0 : i32
    %c0_i32_0 = arith.constant 0 : i32
    %c0_i32_1 = arith.constant 0 : i32
    return %c0_i32, %c0_i32_0 : i32, i32
  }
  func.func @transform_3(%arg0: i32) -> (i32, i32, i32) {
    %c0_i32 = arith.constant 0 : i32
    %c0_i32_0 = arith.constant 0 : i32
    %c0_i32_1 = arith.constant 0 : i32
    return %c0_i32, %arg0, %c0_i32_0 : i32, i32, i32
  }
}

</mosaic_0001>

<llo_original>
// kernel: tpu_custom_call.1
$region0: #{tpu_custom_call.1}
  #allocation0 [shape = 'u32[]', space=smem, size = 0x4, offset = 0x4, fixed_abs, tag = 'smem constant byte address 0x4 - core index']
  #allocation1 [shape = 'u32[144,128]{1,0:T(1,128)}', space=vmem, size = 0x12000, scoped, tag = 'internal scratch']
  #allocation6 [shape = 's32[]', space=sflag, size = 0x4, offset = 0, fixed_abs, tag = 'sflag constant byte address 0x0 - dummy sync flag']
  %s0 = inlined_call_operand.vmem [shape: f32[2,32,256], index: 0, kind: input, shape index: {}]
  %s1 = inlined_call_operand.vmem [shape: f32[11,32,1], index: 1, kind: input, shape index: {}]
  %s2 = inlined_call_operand.vmem [shape: f32[2,256], index: 2, kind: input, shape index: {}]
  %s3 = inlined_call_operand.hbm [shape: f32[2,32,256], index: 3, kind: output, shape index: {}]
  %s4 = sld [smem:[#allocation0]]
  $region106: #{tpu_custom_call.1} parent=0
    _
  %s6 = ssub.s32 1, %s4
  %s7 = scalar_select 0, %s6, %s4
  $region1: #{tpu_custom_call.1} parent=0
    #allocation2 [shape = 'u8[65536]{0}', space=vmem, size = 0x10000, scoped, tag = 'input window, operand 0']
    #allocation3 [shape = 'u8[180224]{0}', space=vmem, size = 0x2c000, scoped, tag = 'input window, operand 1']
    #allocation4 [shape = 'u8[65536]{0}', space=vmem, size = 0x10000, scoped, tag = 'output window, operand 0']
    #allocation5 [shape = 's32[2]{0}', space=sflag, size = 0x8, scoped, tag = 'scoped memory for tpu_custom_call.1']
    %8 = vsyncpa [#allocation5], 0
    %s9 = scalar_lea.sflag [#allocation5], 1
    %10 = vsyncpa %s9, 0
    loop: start=0, step=1, limit=4
    $region2: #{tpu_custom_call.1} parent=1 // loop_pre_header
      _
    $region3: #{tpu_custom_call.1} parent=1 // loop_header
      %s12 = sphi 0, %s16
      %p13 = scmp.ge.s32.totalorder %s12, 4
      %s22 = sphi 0, %s24
      %s25 = sphi 0, %s22
      %s26 = sphi 0, %s25
      %s42 = sphi 0, %s26
      %s48 = sphi 0, %s50
      %s51 = sphi 0, %s48
      %s52 = sphi 0, %s51
      %s68 = sphi 0, %s52
      %s72 = sphi 0, %s72
      %s74 = sphi 0, %s72
      %s75 = sphi 0, %s74
      %s89 = sphi 0, %s75
      %s95 = sphi 0, %s97
      %s98 = sphi 0, %s95
      %s99 = sphi 0, %s98
      %s115 = sphi 0, %s99
    $region4: #{tpu_custom_call.1} parent=1 // loop_header_branch
      %15 = sbr.rel (%p13) target = $region8
    $region5: #{tpu_custom_call.1} parent=1 // loop_body
      %s17 = ssub.s32 %s12, 1
      %s18 = ssub.s32 %s12, 2
      %s19 = sadd.s32 %s12, 1
      %s20 = ssub.s32 %s12, %s19
      %p21 = scmp.eq.s32.totalorder %s20, 0
      %s23 = sadd.s32 %s22, 1
      %s24 = scalar_select %p21, %s22, %s23
      %p27 = pneg %p21
      %p28 = scmp.eq.s32.totalorder %s12, 1
      %p29 = por %p27, %p28
      %p30 = scmp.ne.s32.totalorder %s22, %s25
      %p31 = scmp.eq.s32.totalorder %s12, 0
      %p32 = por %p30, %p31
      %p33 = scmp.ne.s32.totalorder %s22, %s25
      %p34 = scmp.eq.s32.totalorder %s17, 1
      %p35 = por %p33, %p34
      %p36 = scmp.ne.s32.totalorder %s25, %s26
      %p37 = scmp.eq.s32.totalorder %s17, 0
      %p38 = por %p36, %p37
      %p39 = scmp.ne.s32.totalorder %s25, %s26
      %p40 = scmp.eq.s32.totalorder %s18, 1
      %p41 = por %p39, %p40
      %p43 = scmp.ne.s32.totalorder %s26, %s42
      %p44 = scmp.eq.s32.totalorder %s18, 0
      %p45 = por %p43, %p44
      %s46 = ssub.s32 %s12, %s19
      %p47 = scmp.eq.s32.totalorder %s46, 0
      %s49 = sadd.s32 %s48, 1
      %s50 = scalar_select %p47, %s48, %s49
      %p53 = pneg %p47
      %p54 = scmp.eq.s32.totalorder %s12, 1
      %p55 = por %p53, %p54
      %p56 = scmp.ne.s32.totalorder %s48, %s51
      %p57 = scmp.eq.s32.totalorder %s12, 0
      %p58 = por %p56, %p57
      %p59 = scmp.ne.s32.totalorder %s48, %s51
      %p60 = scmp.eq.s32.totalorder %s17, 1
      %p61 = por %p59, %p60
      %p62 = scmp.ne.s32.totalorder %s51, %s52
      %p63 = scmp.eq.s32.totalorder %s17, 0
      %p64 = por %p62, %p63
      %p65 = scmp.ne.s32.totalorder %s51, %s52
      %p66 = scmp.eq.s32.totalorder %s18, 1
      %p67 = por %p65, %p66
      %p69 = scmp.ne.s32.totalorder %s52, %s68
      %p70 = scmp.eq.s32.totalorder %s18, 0
      %p71 = por %p69, %p70
      %s73 = sadd.s32 %s72, 1
      %p76 = scmp.eq.s32.totalorder %s12, 1
      %p77 = scmp.ne.s32.totalorder %s72, %s74
      %p78 = scmp.eq.s32.totalorder %s12, 0
      %p79 = por %p77, %p78
      %p80 = scmp.ne.s32.totalorder %s72, %s74
      %p81 = scmp.eq.s32.totalorder %s17, 1
      %p82 = por %p80, %p81
      %p83 = scmp.ne.s32.totalorder %s74, %s75
      %p84 = scmp.eq.s32.totalorder %s17, 0
      %p85 = por %p83, %p84
      %p86 = scmp.ne.s32.totalorder %s74, %s75
      %p87 = scmp.eq.s32.totalorder %s18, 1
      %p88 = por %p86, %p87
      %p90 = scmp.ne.s32.totalorder %s75, %s89
      %p91 = scmp.eq.s32.totalorder %s18, 0
      %p92 = por %p90, %p91
      %s93 = ssub.s32 %s12, %s19
      %p94 = scmp.eq.s32.totalorder %s93, 0
      %s96 = sadd.s32 %s95, 1
      %s97 = scalar_select %p94, %s95, %s96
      %p100 = pneg %p94
      %p101 = scmp.eq.s32.totalorder %s12, 1
      %p102 = por %p100, %p101
      %p103 = scmp.ne.s32.totalorder %s95, %s98
      %p104 = scmp.eq.s32.totalorder %s12, 0
      %p105 = por %p103, %p104
      %p106 = scmp.ne.s32.totalorder %s95, %s98
      %p107 = scmp.eq.s32.totalorder %s17, 1
      %p108 = por %p106, %p107
      %p109 = scmp.ne.s32.totalorder %s98, %s99
      %p110 = scmp.eq.s32.totalorder %s17, 0
      %p111 = por %p109, %p110
      %p112 = scmp.ne.s32.totalorder %s98, %s99
      %p113 = scmp.eq.s32.totalorder %s18, 1
      %p114 = por %p112, %p113
      %p116 = scmp.ne.s32.totalorder %s99, %s115
      %p117 = scmp.eq.s32.totalorder %s18, 0
      %p118 = por %p116, %p117
      %p119 = scmp.le.s32.totalorder 1, %s12
      %p120 = scmp.lt.s32.totalorder %s12, 3
      %p121 = pnand %p119, %p120
      %p122 = pneg %p121
      // Predicated region
      $region9: #{tpu_custom_call.1} parent=5 // pred_check
        _
      $region10: #{tpu_custom_call.1} parent=5 // pred_check_branch
        %124 = sbr.rel (%p121) target = $region12
      $region11: #{tpu_custom_call.1} parent=5 // pred_region
        %s125 = ssub.s32 %s12, 1
        // Predicated region
        $region13: #{tpu_custom_call.1} parent=11 // pred_check
          %p126 = pneg %p85
        $region14: #{tpu_custom_call.1} parent=11 // pred_check_branch
          %128 = sbr.rel (%p126) target = $region16
        $region15: #{tpu_custom_call.1} parent=11 // pred_region
          _
        $region16: #{tpu_custom_call.1} parent=11 // pred_fallthru
          _
      $region12: #{tpu_custom_call.1} parent=5 // pred_fallthru
        _
      %p129 = scmp.lt.s32.totalorder %s12, 2
      // Predicated region
      $region17: #{tpu_custom_call.1} parent=5 // pred_check
        %p130 = pneg %p129
      $region18: #{tpu_custom_call.1} parent=5 // pred_check_branch
        %132 = sbr.rel (%p130) target = $region20
      $region19: #{tpu_custom_call.1} parent=5 // pred_region
        // Predicated region
        $region21: #{tpu_custom_call.1} parent=19 // pred_check
          %p133 = pneg %p32
        $region22: #{tpu_custom_call.1} parent=19 // pred_check_branch
          %135 = sbr.rel (%p133) target = $region24
        $region23: #{tpu_custom_call.1} parent=19 // pred_region
          %s136 = sand.u32 %s22, 1
          %s137 = sand.u32 %s22, 1
          %s138 = smul.addr %s137, 64
          %s139 = scalar_lea.vmem [#allocation2], %s138
          %s140 = smul.u32 2, %s12
          %s141 = smul.addr %s140, 2
          %s142 = smul.addr %s141, 8
          %s143 = scalar_lea.vmem %s0, %s142
          // Predicated region
          $region25: #{tpu_custom_call.1} parent=23 // pred_check
            _
          $region26: #{tpu_custom_call.1} parent=23 // pred_check_branch
            %145 = sbr.rel (0) target = $region28
          $region27: #{tpu_custom_call.1} parent=23 // pred_region
            // Predicated region
            $region29: #{tpu_custom_call.1} parent=27 // pred_check
              _
            $region30: #{tpu_custom_call.1} parent=27 // pred_check_branch
              %147 = sbr.rel (0) target = $region32
            $region31: #{tpu_custom_call.1} parent=27 // pred_region
              loop: start=0, step=1, limit=1
              $region33: #{tpu_custom_call.1} parent=31 // loop_pre_header
                _
              $region34: #{tpu_custom_call.1} parent=31 // loop_header
                %s149 = sphi 0, %s153
                %p150 = scmp.ge.s32.totalorder %s149, 1
                %s154 = sphi %s143, %s143
                %s155 = sphi %s139, %s139
              $region35: #{tpu_custom_call.1} parent=31 // loop_header_branch
                %152 = sbr.rel (%p150) target = $region39
              $region36: #{tpu_custom_call.1} parent=31 // loop_body
                %v156 = vld [vmem:[%s154] sm:$0xff]
                %157 = vst [vmem:[%s155] sm:$0xff] %v156
                %v158 = vld [vmem:[%s154 + $0x8] sm:$0xff]
                %159 = vst [vmem:[%s155 + $0x8] sm:$0xff] %v158
                %v160 = vld [vmem:[%s154 + $0x10] sm:$0xff]
                %161 = vst [vmem:[%s155 + $0x10] sm:$0xff] %v160
                %v162 = vld [vmem:[%s154 + $0x18] sm:$0xff]
                %163 = vst [vmem:[%s155 + $0x18] sm:$0xff] %v162
                %v164 = vld [vmem:[%s154 + $0x40] sm:$0xff]
                %165 = vst [vmem:[%s155 + $0x20] sm:$0xff] %v164
                %v166 = vld [vmem:[%s154 + $0x48] sm:$0xff]
                %167 = vst [vmem:[%s155 + $0x28] sm:$0xff] %v166
                %v168 = vld [vmem:[%s154 + $0x50] sm:$0xff]
                %169 = vst [vmem:[%s155 + $0x30] sm:$0xff] %v168
                %v170 = vld [vmem:[%s154 + $0x58] sm:$0xff]
                %171 = vst [vmem:[%s155 + $0x38] sm:$0xff] %v170
              $region37: #{tpu_custom_call.1} parent=31 // loop_footer
                %s153 = sadd.s32 1, %s149
              $region38: #{tpu_custom_call.1} parent=31 // loop_footer_branch
                %148 = sbr.rel target = $region34
              $region39: #{tpu_custom_call.1} parent=31 // loop_exit
                _
            $region32: #{tpu_custom_call.1} parent=27 // pred_fallthru
              _
            // Predicated region
            $region40: #{tpu_custom_call.1} parent=27 // pred_check
              _
            $region41: #{tpu_custom_call.1} parent=27 // pred_check_branch
              %173 = sbr.rel target = $region43
            $region42: #{tpu_custom_call.1} parent=27 // pred_region
              _
            $region43: #{tpu_custom_call.1} parent=27 // pred_fallthru
              _
          $region28: #{tpu_custom_call.1} parent=23 // pred_fallthru
            _
          %174 = vnop
        $region24: #{tpu_custom_call.1} parent=19 // pred_fallthru
          _
        // Predicated region
        $region44: #{tpu_custom_call.1} parent=19 // pred_check
          %p175 = pneg %p58
        $region45: #{tpu_custom_call.1} parent=19 // pred_check_branch
          %177 = sbr.rel (%p175) target = $region47
        $region46: #{tpu_custom_call.1} parent=19 // pred_region
          %s178 = sand.u32 %s48, 1
          %s179 = sand.u32 %s48, 1
          %s180 = smul.addr %s179, 176
          %s181 = scalar_lea.vmem [#allocation3], %s180
          %s182 = smul.u32 2, %s12
          %s183 = smul.addr %s182, 8
          %s184 = scalar_lea.vmem %s1, %s183
          // Predicated region
          $region48: #{tpu_custom_call.1} parent=46 // pred_check
            _
          $region49: #{tpu_custom_call.1} parent=46 // pred_check_branch
            %186 = sbr.rel (0) target = $region51
          $region50: #{tpu_custom_call.1} parent=46 // pred_region
            // Predicated region
            $region52: #{tpu_custom_call.1} parent=50 // pred_check
              _
            $region53: #{tpu_custom_call.1} parent=50 // pred_check_branch
              %188 = sbr.rel (0) target = $region55
            $region54: #{tpu_custom_call.1} parent=50 // pred_region
              // Predicated region
              $region67: #{tpu_custom_call.1} parent=54 // pred_check
                _
              $region68: #{tpu_custom_call.1} parent=54 // pred_check_branch
                %245 = sbr.rel (0) target = $region70
              $region69: #{tpu_custom_call.1} parent=54 // pred_region
                loop: start=0, step=1, limit=1
                $region71: #{tpu_custom_call.1} parent=69 // loop_pre_header
                  _
                $region72: #{tpu_custom_call.1} parent=69 // loop_header
                  %s247 = sphi 0, %s251
                  %p248 = scmp.ge.s32.totalorder %s247, 1
                  %s252 = sphi %s184, %s184
                  %s253 = sphi %s181, %s181
                $region73: #{tpu_custom_call.1} parent=69 // loop_header_branch
                  %250 = sbr.rel (%p248) target = $region77
                $region74: #{tpu_custom_call.1} parent=69 // loop_body
                  %v254 = vld [vmem:[%s252] sm:$0xff]
                  %255 = vst [vmem:[%s253] sm:$0xff] %v254
                  %v256 = vld [vmem:[%s252 + $0x8] sm:$0xff]
                  %257 = vst [vmem:[%s253 + $0x8] sm:$0xff] %v256
                  %v258 = vld [vmem:[%s252 + $0x20] sm:$0xff]
                  %259 = vst [vmem:[%s253 + $0x10] sm:$0xff] %v258
                  %v260 = vld [vmem:[%s252 + $0x28] sm:$0xff]
                  %261 = vst [vmem:[%s253 + $0x18] sm:$0xff] %v260
                  %v262 = vld [vmem:[%s252 + $0x40] sm:$0xff]
                  %263 = vst [vmem:[%s253 + $0x20] sm:$0xff] %v262
                  %v264 = vld [vmem:[%s252 + $0x48] sm:$0xff]
                  %265 = vst [vmem:[%s253 + $0x28] sm:$0xff] %v264
                  %v266 = vld [vmem:[%s252 + $0x60] sm:$0xff]
                  %267 = vst [vmem:[%s253 + $0x30] sm:$0xff] %v266
                  %v268 = vld [vmem:[%s252 + $0x68] sm:$0xff]
                  %269 = vst [vmem:[%s253 + $0x38] sm:$0xff] %v268
                  %v270 = vld [vmem:[%s252 + $0x80] sm:$0xff]
                  %271 = vst [vmem:[%s253 + $0x40] sm:$0xff] %v270
                  %v272 = vld [vmem:[%s252 + $0x88] sm:$0xff]
                  %273 = vst [vmem:[%s253 + $0x48] sm:$0xff] %v272
                  %v274 = vld [vmem:[%s252 + $0xa0] sm:$0xff]
                  %275 = vst [vmem:[%s253 + $0x50] sm:$0xff] %v274
                  %v276 = vld [vmem:[%s252 + $0xa8] sm:$0xff]
                  %277 = vst [vmem:[%s253 + $0x58] sm:$0xff] %v276
                  %v278 = vld [vmem:[%s252 + $0xc0] sm:$0xff]
                  %279 = vst [vmem:[%s253 + $0x60] sm:$0xff] %v278
                  %v280 = vld [vmem:[%s252 + $0xc8] sm:$0xff]
                  %281 = vst [vmem:[%s253 + $0x68] sm:$0xff] %v280
                  %v282 = vld [vmem:[%s252 + $0xe0] sm:$0xff]
                  %283 = vst [vmem:[%s253 + $0x70] sm:$0xff] %v282
                  %v284 = vld [vmem:[%s252 + $0xe8] sm:$0xff]
                  %285 = vst [vmem:[%s253 + $0x78] sm:$0xff] %v284
                  %v286 = vld [vmem:[%s252 + $0x100] sm:$0xff]
                  %287 = vst [vmem:[%s253 + $0x80] sm:$0xff] %v286
                  %v288 = vld [vmem:[%s252 + $0x108] sm:$0xff]
                  %289 = vst [vmem:[%s253 + $0x88] sm:$0xff] %v288
                  %v290 = vld [vmem:[%s252 + $0x120] sm:$0xff]
                  %291 = vst [vmem:[%s253 + $0x90] sm:$0xff] %v290
                  %v292 = vld [vmem:[%s252 + $0x128] sm:$0xff]
                  %293 = vst [vmem:[%s253 + $0x98] sm:$0xff] %v292
                  %v294 = vld [vmem:[%s252 + $0x140] sm:$0xff]
                  %295 = vst [vmem:[%s253 + $0xa0] sm:$0xff] %v294
                  %v296 = vld [vmem:[%s252 + $0x148] sm:$0xff]
                  %297 = vst [vmem:[%s253 + $0xa8] sm:$0xff] %v296
                $region75: #{tpu_custom_call.1} parent=69 // loop_footer
                  %s251 = sadd.s32 1, %s247
                $region76: #{tpu_custom_call.1} parent=69 // loop_footer_branch
                  %246 = sbr.rel target = $region72
                $region77: #{tpu_custom_call.1} parent=69 // loop_exit
                  _
              $region70: #{tpu_custom_call.1} parent=54 // pred_fallthru
                _
              // Predicated region
              $region78: #{tpu_custom_call.1} parent=54 // pred_check
                _
              $region79: #{tpu_custom_call.1} parent=54 // pred_check_branch
                %299 = sbr.rel target = $region81
              $region80: #{tpu_custom_call.1} parent=54 // pred_region
                _
              $region81: #{tpu_custom_call.1} parent=54 // pred_fallthru
                _
            $region55: #{tpu_custom_call.1} parent=50 // pred_fallthru
              _
            // Predicated region
            $region56: #{tpu_custom_call.1} parent=50 // pred_check
              _
            $region57: #{tpu_custom_call.1} parent=50 // pred_check_branch
              %190 = sbr.rel target = $region59
            $region58: #{tpu_custom_call.1} parent=50 // pred_region
              loop: start=0, step=1, limit=1
              $region60: #{tpu_custom_call.1} parent=58 // loop_pre_header
                _
              $region61: #{tpu_custom_call.1} parent=58 // loop_header
                %s193 = sphi 0, %s197
                %p194 = scmp.ge.s32.totalorder %s193, 1
                %s198 = sphi %s184, %s184
                %s199 = sphi %s181, %s181
              $region62: #{tpu_custom_call.1} parent=58 // loop_header_branch
                %196 = sbr.rel (%p194) target = $region66
              $region63: #{tpu_custom_call.1} parent=58 // loop_body
                %v200 = vld [vmem:[%s198] sm:$0xff]
                %201 = vst [vmem:[%s199] sm:$0xff] %v200
                %v202 = vld [vmem:[%s198 + $0x8] sm:$0xff]
                %203 = vst [vmem:[%s199 + $0x8] sm:$0xff] %v202
                %v204 = vld [vmem:[%s198 + $0x20] sm:$0xff]
                %205 = vst [vmem:[%s199 + $0x10] sm:$0xff] %v204
                %v206 = vld [vmem:[%s198 + $0x28] sm:$0xff]
                %207 = vst [vmem:[%s199 + $0x18] sm:$0xff] %v206
                %v208 = vld [vmem:[%s198 + $0x40] sm:$0xff]
                %209 = vst [vmem:[%s199 + $0x20] sm:$0xff] %v208
                %v210 = vld [vmem:[%s198 + $0x48] sm:$0xff]
                %211 = vst [vmem:[%s199 + $0x28] sm:$0xff] %v210
                %v212 = vld [vmem:[%s198 + $0x60] sm:$0xff]
                %213 = vst [vmem:[%s199 + $0x30] sm:$0xff] %v212
                %v214 = vld [vmem:[%s198 + $0x68] sm:$0xff]
                %215 = vst [vmem:[%s199 + $0x38] sm:$0xff] %v214
                %v216 = vld [vmem:[%s198 + $0x80] sm:$0xff]
                %217 = vst [vmem:[%s199 + $0x40] sm:$0xff] %v216
                %v218 = vld [vmem:[%s198 + $0x88] sm:$0xff]
                %219 = vst [vmem:[%s199 + $0x48] sm:$0xff] %v218
                %v220 = vld [vmem:[%s198 + $0xa0] sm:$0xff]
                %221 = vst [vmem:[%s199 + $0x50] sm:$0xff] %v220
                %v222 = vld [vmem:[%s198 + $0xa8] sm:$0xff]
                %223 = vst [vmem:[%s199 + $0x58] sm:$0xff] %v222
                %v224 = vld [vmem:[%s198 + $0xc0] sm:$0xff]
                %225 = vst [vmem:[%s199 + $0x60] sm:$0xff] %v224
                %v226 = vld [vmem:[%s198 + $0xc8] sm:$0xff]
                %227 = vst [vmem:[%s199 + $0x68] sm:$0xff] %v226
                %v228 = vld [vmem:[%s198 + $0xe0] sm:$0xff]
                %229 = vst [vmem:[%s199 + $0x70] sm:$0xff] %v228
                %v230 = vld [vmem:[%s198 + $0xe8] sm:$0xff]
                %231 = vst [vmem:[%s199 + $0x78] sm:$0xff] %v230
                %v232 = vld [vmem:[%s198 + $0x100] sm:$0xff]
                %233 = vst [vmem:[%s199 + $0x80] sm:$0xff] %v232
                %v234 = vld [vmem:[%s198 + $0x108] sm:$0xff]
                %235 = vst [vmem:[%s199 + $0x88] sm:$0xff] %v234
                %v236 = vld [vmem:[%s198 + $0x120] sm:$0xff]
                %237 = vst [vmem:[%s199 + $0x90] sm:$0xff] %v236
                %v238 = vld [vmem:[%s198 + $0x128] sm:$0xff]
                %239 = vst [vmem:[%s199 + $0x98] sm:$0xff] %v238
                %v240 = vld [vmem:[%s198 + $0x140] sm:$0xff]
                %241 = vst [vmem:[%s199 + $0xa0] sm:$0xff] %v240
                %v242 = vld [vmem:[%s198 + $0x148] sm:$0xff]
                %243 = vst [vmem:[%s199 + $0xa8] sm:$0xff] %v242
              $region64: #{tpu_custom_call.1} parent=58 // loop_footer
                %s197 = sadd.s32 1, %s193
              $region65: #{tpu_custom_call.1} parent=58 // loop_footer_branch
                %192 = sbr.rel target = $region61
              $region66: #{tpu_custom_call.1} parent=58 // loop_exit
                _
            $region59: #{tpu_custom_call.1} parent=50 // pred_fallthru
              _
          $region51: #{tpu_custom_call.1} parent=46 // pred_fallthru
            _
          %300 = vnop
        $region47: #{tpu_custom_call.1} parent=19 // pred_fallthru
          _
      $region20: #{tpu_custom_call.1} parent=5 // pred_fallthru
        _
      %p301 = scmp.le.s32.totalorder 1, %s12
      %p302 = scmp.lt.s32.totalorder %s12, 3
      %p303 = pnand %p301, %p302
      %p304 = pneg %p303
      // Predicated region
      $region82: #{tpu_custom_call.1} parent=5 // pred_check
        _
      $region83: #{tpu_custom_call.1} parent=5 // pred_check_branch
        %306 = sbr.rel (%p303) target = $region85
      $region84: #{tpu_custom_call.1} parent=5 // pred_region
        %s307 = ssub.s32 %s12, 1
        %s308 = sand.u32 %s25, 1
        %s309 = sand.u32 %s25, 1
        %s310 = smul.addr %s309, 64
        %s311 = scalar_lea.vmem [#allocation2], %s310
        // Predicated region
        $region86: #{tpu_custom_call.1} parent=84 // pred_check
          %p312 = pneg %p38
        $region87: #{tpu_custom_call.1} parent=84 // pred_check_branch
          %314 = sbr.rel (%p312) target = $region89
        $region88: #{tpu_custom_call.1} parent=84 // pred_region
          _
        $region89: #{tpu_custom_call.1} parent=84 // pred_fallthru
          _
        %s315 = sand.u32 %s51, 1
        %s316 = sand.u32 %s51, 1
        %s317 = smul.addr %s316, 176
        %s318 = scalar_lea.vmem [#allocation3], %s317
        // Predicated region
        $region90: #{tpu_custom_call.1} parent=84 // pred_check
          %p319 = pneg %p64
        $region91: #{tpu_custom_call.1} parent=84 // pred_check_branch
          %321 = sbr.rel (%p319) target = $region93
        $region92: #{tpu_custom_call.1} parent=84 // pred_region
          _
        $region93: #{tpu_custom_call.1} parent=84 // pred_fallthru
          _
        %s322 = sand.u32 %s25, 1
        %s323 = sand.u32 %s25, 1
        %s324 = smul.addr %s323, 64
        %s325 = scalar_lea.vmem [#allocation2], %s324
        %p326 = pneg %p38
        %p327 = pneg %p35
        %s328 = sand.u32 %s51, 1
        %s329 = sand.u32 %s51, 1
        %s330 = smul.addr %s329, 176
        %s331 = scalar_lea.vmem [#allocation3], %s330
        %p332 = pneg %p64
        %p333 = pneg %p61
        %p334 = pneg %p85
        %p335 = pneg %p82
        %p336 = pneg %p111
        %p337 = pneg %p108
        %s338 = sand.u32 %s98, 1
        %s339 = scalar_lea.sflag [#allocation5], %s338
        %s340 = sand.u32 %s98, 1
        %s341 = smul.addr %s340, 64
        %s342 = scalar_lea.vmem [#allocation4], %s341
        %s343 = smul.u32 2, %s17
        %s344 = smul.u32 2, %s17
        %s345 = smul.u32 2, %s17
        %v346 = vld [vmem:[%s311] sm:$0xff]
        %v347 = vld [vmem:[%s311 + $0x8] sm:$0xff]
        %v348 = vld [vmem:[%s311 + $0x10] sm:$0xff]
        %v349 = vld [vmem:[%s311 + $0x18] sm:$0xff]
        %v350 = vld [vmem:[%s311 + $0x20] sm:$0xff]
        %v351 = vld [vmem:[%s311 + $0x28] sm:$0xff]
        %v352 = vld [vmem:[%s311 + $0x30] sm:$0xff]
        %v353 = vld [vmem:[%s311 + $0x38] sm:$0xff]
        %v354 = vld [vmem:[%s318] sm:$0xff]
        %v355 = vld [vmem:[%s318 + $0x8] sm:$0xff]
        %v356 = vld [vmem:[%s318 + $0x10] sm:$0xff]
        %v357 = vld [vmem:[%s318 + $0x18] sm:$0xff]
        %v358 = vld [vmem:[%s318 + $0x20] sm:$0xff]
        %v359 = vld [vmem:[%s318 + $0x28] sm:$0xff]
        %v360 = vld [vmem:[%s318 + $0x30] sm:$0xff]
        %v361 = vld [vmem:[%s318 + $0x38] sm:$0xff]
        %v362 = vld [vmem:[%s318 + $0x40] sm:$0xff]
        %v363 = vld [vmem:[%s318 + $0x48] sm:$0xff]
        %v364 = vld [vmem:[%s318 + $0x50] sm:$0xff]
        %v365 = vld [vmem:[%s318 + $0x58] sm:$0xff]
        %v366 = vld [vmem:[%s318 + $0x60] sm:$0xff]
        %v367 = vld [vmem:[%s318 + $0x68] sm:$0xff]
        %v368 = vld [vmem:[%s318 + $0x70] sm:$0xff]
        %v369 = vld [vmem:[%s318 + $0x78] sm:$0xff]
        %v370 = vld [vmem:[%s318 + $0x80] sm:$0xff]
        %v371 = vld [vmem:[%s318 + $0x88] sm:$0xff]
        %v372 = vld [vmem:[%s318 + $0x90] sm:$0xff]
        %v373 = vld [vmem:[%s318 + $0x98] sm:$0xff]
        %v374 = vld [vmem:[%s318 + $0xa0] sm:$0xff]
        %v375 = vld [vmem:[%s318 + $0xa8] sm:$0xff]
        %v376 = vld [vmem:[%s2] sm:$0xf]
        %v377 = vlaneseq
        %v378 = vand.u32 %v377, 127
        %v379 = vadd.s32 %v378, 128
        %vm380 = vcmp.ge.s32.totalorder %v378, 16
        %vm381 = vcmp.ge.s32.totalorder %v379, 16
        %v382 = vsel %vm380, 1, 0
        %v383 = vsel %vm381, 1, 0
        %v384 = vcvt.s32.f32 %v382
        %v385 = vcvt.s32.f32 %v383
        %vm386 = vcmp.lt.s32.totalorder %v378, 240
        %vm387 = vcmp.lt.s32.totalorder %v379, 240
        %v388 = vsel %vm386, 1, 0
        %v389 = vsel %vm387, 1, 0
        %v390 = vcvt.s32.f32 %v388
        %v391 = vcvt.s32.f32 %v389
        %v393 = vlaneseq
        %v394 = vshrl.u32 %v393, 7
        %v395 = vsub.s32 0, %v394
        %v396 = vrot.slane %v376, %v395
        %v397 = vlaneseq
        %v398 = vshrl.u32 %v397, 7
        %v399 = vsub.s32 2, %v398
        %v400 = vrot.slane %v376, %v399
        %v403 = vlaneseq
        %v404 = vshrl.u32 %v403, 7
        %v405 = vsub.s32 0, %v404
        %v406 = vrot.slane %v396, %v405
        %v407 = vlaneseq
        %v408 = vshrl.u32 %v407, 7
        %v409 = vsub.s32 0, %v408
        %v410 = vrot.slane %v400, %v409
        %v411 = vmul.f32 %v346, %v406
        %v412 = vmul.f32 %v347, %v410
        %v413 = vmul.f32 %v348, %v406
        %v414 = vmul.f32 %v349, %v410
        %v415 = vmul.f32 %v350, %v406
        %v416 = vmul.f32 %v351, %v410
        %v417 = vmul.f32 %v352, %v406
        %v418 = vmul.f32 %v353, %v410
        %419 = vrot.lane.b32.xlu0 %v411, 127
        %v420 = vpop.permute.xlu0 %419
        %421 = vrot.lane.b32.xlu0 %v413, 127
        %v422 = vpop.permute.xlu0 %421
        %423 = vrot.lane.b32.xlu0 %v415, 127
        %v424 = vpop.permute.xlu0 %423
        %425 = vrot.lane.b32.xlu0 %v417, 127
        %v426 = vpop.permute.xlu0 %425
        %427 = vrot.lane.b32.xlu0 %v412, 127
        %v428 = vpop.permute.xlu0 %427
        %429 = vrot.lane.b32.xlu0 %v414, 127
        %v430 = vpop.permute.xlu0 %429
        %431 = vrot.lane.b32.xlu0 %v416, 127
        %v432 = vpop.permute.xlu0 %431
        %433 = vrot.lane.b32.xlu0 %v418, 127
        %v434 = vpop.permute.xlu0 %433
        %vm435 = vcmp.lt.s32.totalorder %v378, 127
        %v436 = vsel %vm435, %v420, %v428
        %v437 = vsel %vm435, %v422, %v430
        %v438 = vsel %vm435, %v424, %v432
        %v439 = vsel %vm435, %v426, %v434
        %v440 = vsel %vm435, %v428, %v420
        %v441 = vsel %vm435, %v430, %v422
        %v442 = vsel %vm435, %v432, %v424
        %v443 = vsel %vm435, %v434, %v426
        %v444 = vlaneseq
        %v445 = vshrl.u32 %v444, 7
        %v446 = vsub.s32 1, %v445
        %v447 = vrot.slane %v376, %v446
        %v448 = vlaneseq
        %v449 = vshrl.u32 %v448, 7
        %v450 = vsub.s32 3, %v449
        %v451 = vrot.slane %v376, %v450
        %v454 = vlaneseq
        %v455 = vshrl.u32 %v454, 7
        %v456 = vsub.s32 1, %v455
        %v457 = vrot.slane %v447, %v456
        %v458 = vlaneseq
        %v459 = vshrl.u32 %v458, 7
        %v460 = vsub.s32 1, %v459
        %v461 = vrot.slane %v451, %v460
        %v462 = vmul.f32 %v346, %v457
        %v463 = vmul.f32 %v347, %v461
        %v464 = vmul.f32 %v348, %v457
        %v465 = vmul.f32 %v349, %v461
        %v466 = vmul.f32 %v350, %v457
        %v467 = vmul.f32 %v351, %v461
        %v468 = vmul.f32 %v352, %v457
        %v469 = vmul.f32 %v353, %v461
        %470 = vrot.lane.b32.xlu0 %v462, 1
        %v471 = vpop.permute.xlu0 %470
        %472 = vrot.lane.b32.xlu0 %v464, 1
        %v473 = vpop.permute.xlu0 %472
        %474 = vrot.lane.b32.xlu0 %v466, 1
        %v475 = vpop.permute.xlu0 %474
        %476 = vrot.lane.b32.xlu0 %v468, 1
        %v477 = vpop.permute.xlu0 %476
        %478 = vrot.lane.b32.xlu0 %v463, 1
        %v479 = vpop.permute.xlu0 %478
        %480 = vrot.lane.b32.xlu0 %v465, 1
        %v481 = vpop.permute.xlu0 %480
        %482 = vrot.lane.b32.xlu0 %v467, 1
        %v483 = vpop.permute.xlu0 %482
        %484 = vrot.lane.b32.xlu0 %v469, 1
        %v485 = vpop.permute.xlu0 %484
        %vm486 = vcmp.lt.s32.totalorder %v378, 1
        %v487 = vsel %vm486, %v471, %v479
        %v488 = vsel %vm486, %v473, %v481
        %v489 = vsel %vm486, %v475, %v483
        %v490 = vsel %vm486, %v477, %v485
        %v491 = vsel %vm486, %v479, %v471
        %v492 = vsel %vm486, %v481, %v473
        %v493 = vsel %vm486, %v483, %v475
        %v494 = vsel %vm486, %v485, %v477
        %496 = vset.pattern.permute.xlu0 0
        %497 = vperm.xlu0 %496, %v354
        %v498 = vpop.permute.xlu0 %497
        %501 = vset.pattern.permute.xlu0 0
        %502 = vperm.xlu0 %501, %v355
        %v503 = vpop.permute.xlu0 %502
        %v505 = vmul.f32 %v498, %v491
        %v506 = vmul.f32 %v498, %v487
        %v507 = vmul.f32 %v503, %v492
        %v508 = vmul.f32 %v503, %v488
        %v509 = vmul.f32 %v498, %v493
        %v510 = vmul.f32 %v498, %v489
        %v511 = vmul.f32 %v503, %v494
        %v512 = vmul.f32 %v503, %v490
        %514 = vset.pattern.permute.xlu0 0
        %515 = vperm.xlu0 %514, %v356
        %v516 = vpop.permute.xlu0 %515
        %519 = vset.pattern.permute.xlu0 0
        %520 = vperm.xlu0 %519, %v357
        %v521 = vpop.permute.xlu0 %520
        %v523 = vmul.f32 %v516, %v346
        %v524 = vmul.f32 %v516, %v347
        %v525 = vmul.f32 %v521, %v348
        %v526 = vmul.f32 %v521, %v349
        %v527 = vmul.f32 %v516, %v350
        %v528 = vmul.f32 %v516, %v351
        %v529 = vmul.f32 %v521, %v352
        %v530 = vmul.f32 %v521, %v353
        %v531 = vadd.f32 %v505, %v523
        %v532 = vadd.f32 %v506, %v524
        %v533 = vadd.f32 %v507, %v525
        %v534 = vadd.f32 %v508, %v526
        %v535 = vadd.f32 %v509, %v527
        %v536 = vadd.f32 %v510, %v528
        %v537 = vadd.f32 %v511, %v529
        %v538 = vadd.f32 %v512, %v530
        %540 = vset.pattern.permute.xlu0 0
        %541 = vperm.xlu0 %540, %v358
        %v542 = vpop.permute.xlu0 %541
        %545 = vset.pattern.permute.xlu0 0
        %546 = vperm.xlu0 %545, %v359
        %v547 = vpop.permute.xlu0 %546
        %v549 = vmul.f32 %v542, %v436
        %v550 = vmul.f32 %v542, %v440
        %v551 = vmul.f32 %v547, %v437
        %v552 = vmul.f32 %v547, %v441
        %v553 = vmul.f32 %v542, %v438
        %v554 = vmul.f32 %v542, %v442
        %v555 = vmul.f32 %v547, %v439
        %v556 = vmul.f32 %v547, %v443
        %v557 = vadd.f32 %v531, %v549
        %v558 = vadd.f32 %v532, %v550
        %v559 = vadd.f32 %v533, %v551
        %v560 = vadd.f32 %v534, %v552
        %v561 = vadd.f32 %v535, %v553
        %v562 = vadd.f32 %v536, %v554
        %v563 = vadd.f32 %v537, %v555
        %v564 = vadd.f32 %v538, %v556
        %566 = vset.pattern.permute.xlu0 0
        %567 = vperm.xlu0 %566, %v360
        %v568 = vpop.permute.xlu0 %567
        %571 = vset.pattern.permute.xlu0 0
        %572 = vperm.xlu0 %571, %v361
        %v573 = vpop.permute.xlu0 %572
        %v575 = vmul.f32 %v568, %v491
        %v576 = vmul.f32 %v568, %v487
        %v577 = vmul.f32 %v573, %v492
        %v578 = vmul.f32 %v573, %v488
        %v579 = vmul.f32 %v568, %v493
        %v580 = vmul.f32 %v568, %v489
        %v581 = vmul.f32 %v573, %v494
        %v582 = vmul.f32 %v573, %v490
        %584 = vset.pattern.permute.xlu0 0
        %585 = vperm.xlu0 %584, %v362
        %v586 = vpop.permute.xlu0 %585
        %589 = vset.pattern.permute.xlu0 0
        %590 = vperm.xlu0 %589, %v363
        %v591 = vpop.permute.xlu0 %590
        %v593 = vmul.f32 %v586, %v346
        %v594 = vmul.f32 %v586, %v347
        %v595 = vmul.f32 %v591, %v348
        %v596 = vmul.f32 %v591, %v349
        %v597 = vmul.f32 %v586, %v350
        %v598 = vmul.f32 %v586, %v351
        %v599 = vmul.f32 %v591, %v352
        %v600 = vmul.f32 %v591, %v353
        %v601 = vadd.f32 %v575, %v593
        %v602 = vadd.f32 %v576, %v594
        %v603 = vadd.f32 %v577, %v595
        %v604 = vadd.f32 %v578, %v596
        %v605 = vadd.f32 %v579, %v597
        %v606 = vadd.f32 %v580, %v598
        %v607 = vadd.f32 %v581, %v599
        %v608 = vadd.f32 %v582, %v600
        %610 = vset.pattern.permute.xlu0 0
        %611 = vperm.xlu0 %610, %v364
        %v612 = vpop.permute.xlu0 %611
        %615 = vset.pattern.permute.xlu0 0
        %616 = vperm.xlu0 %615, %v365
        %v617 = vpop.permute.xlu0 %616
        %v619 = vmul.f32 %v612, %v436
        %v620 = vmul.f32 %v612, %v440
        %v621 = vmul.f32 %v617, %v437
        %v622 = vmul.f32 %v617, %v441
        %v623 = vmul.f32 %v612, %v438
        %v624 = vmul.f32 %v612, %v442
        %v625 = vmul.f32 %v617, %v439
        %v626 = vmul.f32 %v617, %v443
        %v627 = vadd.f32 %v601, %v619
        %v628 = vadd.f32 %v602, %v620
        %v629 = vadd.f32 %v603, %v621
        %v630 = vadd.f32 %v604, %v622
        %v631 = vadd.f32 %v605, %v623
        %v632 = vadd.f32 %v606, %v624
        %v633 = vadd.f32 %v607, %v625
        %v634 = vadd.f32 %v608, %v626
        %636 = vset.pattern.permute.xlu0 0
        %637 = vperm.xlu0 %636, %v366
        %v638 = vpop.permute.xlu0 %637
        %641 = vset.pattern.permute.xlu0 0
        %642 = vperm.xlu0 %641, %v367
        %v643 = vpop.permute.xlu0 %642
        %v645 = vmul.f32 %v638, %v491
        %v646 = vmul.f32 %v638, %v487
        %v647 = vmul.f32 %v643, %v492
        %v648 = vmul.f32 %v643, %v488
        %v649 = vmul.f32 %v638, %v493
        %v650 = vmul.f32 %v638, %v489
        %v651 = vmul.f32 %v643, %v494
        %v652 = vmul.f32 %v643, %v490
        %654 = vset.pattern.permute.xlu0 0
        %655 = vperm.xlu0 %654, %v368
        %v656 = vpop.permute.xlu0 %655
        %659 = vset.pattern.permute.xlu0 0
        %660 = vperm.xlu0 %659, %v369
        %v661 = vpop.permute.xlu0 %660
        %v663 = vmul.f32 %v656, %v346
        %v664 = vmul.f32 %v656, %v347
        %v665 = vmul.f32 %v661, %v348
        %v666 = vmul.f32 %v661, %v349
        %v667 = vmul.f32 %v656, %v350
        %v668 = vmul.f32 %v656, %v351
        %v669 = vmul.f32 %v661, %v352
        %v670 = vmul.f32 %v661, %v353
        %v671 = vadd.f32 %v645, %v663
        %v672 = vadd.f32 %v646, %v664
        %v673 = vadd.f32 %v647, %v665
        %v674 = vadd.f32 %v648, %v666
        %v675 = vadd.f32 %v649, %v667
        %v676 = vadd.f32 %v650, %v668
        %v677 = vadd.f32 %v651, %v669
        %v678 = vadd.f32 %v652, %v670
        %680 = vset.pattern.permute.xlu0 0
        %681 = vperm.xlu0 %680, %v370
        %v682 = vpop.permute.xlu0 %681
        %685 = vset.pattern.permute.xlu0 0
        %686 = vperm.xlu0 %685, %v371
        %v687 = vpop.permute.xlu0 %686
        %v689 = vmul.f32 %v682, %v436
        %v690 = vmul.f32 %v682, %v440
        %v691 = vmul.f32 %v687, %v437
        %v692 = vmul.f32 %v687, %v441
        %v693 = vmul.f32 %v682, %v438
        %v694 = vmul.f32 %v682, %v442
        %v695 = vmul.f32 %v687, %v439
        %v696 = vmul.f32 %v687, %v443
        %v697 = vadd.f32 %v671, %v689
        %v698 = vadd.f32 %v672, %v690
        %v699 = vadd.f32 %v673, %v691
        %v700 = vadd.f32 %v674, %v692
        %v701 = vadd.f32 %v675, %v693
        %v702 = vadd.f32 %v676, %v694
        %v703 = vadd.f32 %v677, %v695
        %v704 = vadd.f32 %v678, %v696
        %705 = vrot.lane.b32.xlu0 %v557, 16
        %v706 = vpop.permute.xlu0 %705
        %707 = vrot.lane.b32.xlu0 %v559, 16
        %v708 = vpop.permute.xlu0 %707
        %709 = vrot.lane.b32.xlu0 %v561, 16
        %v710 = vpop.permute.xlu0 %709
        %711 = vrot.lane.b32.xlu0 %v563, 16
        %v712 = vpop.permute.xlu0 %711
        %713 = vrot.lane.b32.xlu0 %v558, 16
        %v714 = vpop.permute.xlu0 %713
        %715 = vrot.lane.b32.xlu0 %v560, 16
        %v716 = vpop.permute.xlu0 %715
        %717 = vrot.lane.b32.xlu0 %v562, 16
        %v718 = vpop.permute.xlu0 %717
        %719 = vrot.lane.b32.xlu0 %v564, 16
        %v720 = vpop.permute.xlu0 %719
        %vm721 = vcmp.lt.s32.totalorder %v378, 16
        %v722 = vsel %vm721, %v706, %v714
        %v723 = vsel %vm721, %v708, %v716
        %v724 = vsel %vm721, %v710, %v718
        %v725 = vsel %vm721, %v712, %v720
        %v726 = vsel %vm721, %v714, %v706
        %v727 = vsel %vm721, %v716, %v708
        %v728 = vsel %vm721, %v718, %v710
        %v729 = vsel %vm721, %v720, %v712
        %v730 = vmul.f32 %v384, %v726
        %v731 = vmul.f32 %v385, %v722
        %v732 = vmul.f32 %v384, %v727
        %v733 = vmul.f32 %v385, %v723
        %v734 = vmul.f32 %v384, %v728
        %v735 = vmul.f32 %v385, %v724
        %v736 = vmul.f32 %v384, %v729
        %v737 = vmul.f32 %v385, %v725
        %v738 = vadd.f32 %v627, %v730
        %v739 = vadd.f32 %v628, %v731
        %v740 = vadd.f32 %v629, %v732
        %v741 = vadd.f32 %v630, %v733
        %v742 = vadd.f32 %v631, %v734
        %v743 = vadd.f32 %v632, %v735
        %v744 = vadd.f32 %v633, %v736
        %v745 = vadd.f32 %v634, %v737
        %746 = vrot.lane.b32.xlu0 %v697, 112
        %v747 = vpop.permute.xlu0 %746
        %748 = vrot.lane.b32.xlu0 %v699, 112
        %v749 = vpop.permute.xlu0 %748
        %750 = vrot.lane.b32.xlu0 %v701, 112
        %v751 = vpop.permute.xlu0 %750
        %752 = vrot.lane.b32.xlu0 %v703, 112
        %v753 = vpop.permute.xlu0 %752
        %754 = vrot.lane.b32.xlu0 %v698, 112
        %v755 = vpop.permute.xlu0 %754
        %756 = vrot.lane.b32.xlu0 %v700, 112
        %v757 = vpop.permute.xlu0 %756
        %758 = vrot.lane.b32.xlu0 %v702, 112
        %v759 = vpop.permute.xlu0 %758
        %760 = vrot.lane.b32.xlu0 %v704, 112
        %v761 = vpop.permute.xlu0 %760
        %vm762 = vcmp.lt.s32.totalorder %v378, 112
        %v763 = vsel %vm762, %v747, %v755
        %v764 = vsel %vm762, %v749, %v757
        %v765 = vsel %vm762, %v751, %v759
        %v766 = vsel %vm762, %v753, %v761
        %v767 = vsel %vm762, %v755, %v747
        %v768 = vsel %vm762, %v757, %v749
        %v769 = vsel %vm762, %v759, %v751
        %v770 = vsel %vm762, %v761, %v753
        %v771 = vmul.f32 %v390, %v763
        %v772 = vmul.f32 %v391, %v767
        %v773 = vmul.f32 %v390, %v764
        %v774 = vmul.f32 %v391, %v768
        %v775 = vmul.f32 %v390, %v765
        %v776 = vmul.f32 %v391, %v769
        %v777 = vmul.f32 %v390, %v766
        %v778 = vmul.f32 %v391, %v770
        %v779 = vadd.f32 %v738, %v771
        %v780 = vadd.f32 %v739, %v772
        %v781 = vadd.f32 %v740, %v773
        %v782 = vadd.f32 %v741, %v774
        %v783 = vadd.f32 %v742, %v775
        %v784 = vadd.f32 %v743, %v776
        %v785 = vadd.f32 %v744, %v777
        %v786 = vadd.f32 %v745, %v778
        %v787 = vadd.f32 %v779, %v780
        %788 = vadd.xlane.f32.xlu0 %v787
        %v789 = vpop.xlane.xlu0 %788
        %v790 = vadd.f32 %v781, %v782
        %791 = vadd.xlane.f32.xlu0 %v790
        %v792 = vpop.xlane.xlu0 %791
        %v793 = vadd.f32 %v783, %v784
        %794 = vadd.xlane.f32.xlu0 %v793
        %v795 = vpop.xlane.xlu0 %794
        %v796 = vadd.f32 %v785, %v786
        %797 = vadd.xlane.f32.xlu0 %v796
        %v798 = vpop.xlane.xlu0 %797
        %v799 = vadd.f32 %v789, %v795
        %v800 = vadd.f32 %v792, %v798
        %v801 = vmul.f32 %v779, %v779
        %v802 = vmul.f32 %v780, %v780
        %v803 = vmul.f32 %v781, %v781
        %v804 = vmul.f32 %v782, %v782
        %v805 = vmul.f32 %v783, %v783
        %v806 = vmul.f32 %v784, %v784
        %v807 = vmul.f32 %v785, %v785
        %v808 = vmul.f32 %v786, %v786
        %v809 = vadd.f32 %v801, %v802
        %810 = vadd.xlane.f32.xlu0 %v809
        %v811 = vpop.xlane.xlu0 %810
        %v812 = vadd.f32 %v803, %v804
        %813 = vadd.xlane.f32.xlu0 %v812
        %v814 = vpop.xlane.xlu0 %813
        %v815 = vadd.f32 %v805, %v806
        %816 = vadd.xlane.f32.xlu0 %v815
        %v817 = vpop.xlane.xlu0 %816
        %v818 = vadd.f32 %v807, %v808
        %819 = vadd.xlane.f32.xlu0 %v818
        %v820 = vpop.xlane.xlu0 %819
        %v821 = vadd.f32 %v811, %v817
        %v822 = vadd.f32 %v814, %v820
        %v823 = vmul.f32 %v799, 0.001953125
        %v824 = vmul.f32 %v800, 0.001953125
        %v825 = vmul.f32 %v821, 0.001953125
        %v826 = vmul.f32 %v822, 0.001953125
        %v827 = vmul.f32 %v823, %v823
        %v828 = vmul.f32 %v824, %v824
        %v829 = vsub.f32 %v825, %v827
        %v830 = vsub.f32 %v826, %v828
        %v831 = vmax.f32 %v829, 0.0
        %v832 = vmax.f32 %v830, 0.0
        %v833 = vadd.f32 %v831, 0.001
        %v834 = vadd.f32 %v832, 0.001
        %v835 = vrsqrt.pop %v833
        %v836 = vrsqrt.pop %v834
        %v837 = vmul.f32 %v372, %v835
        %v838 = vmul.f32 %v373, %v836
        %v839 = vmul.f32 %v823, %v837
        %v840 = vmul.f32 %v824, %v838
        %v841 = vsub.f32 %v374, %v839
        %v842 = vsub.f32 %v375, %v840
        %844 = vset.pattern.permute.xlu0 0
        %845 = vperm.xlu0 %844, %v837
        %v846 = vpop.permute.xlu0 %845
        %849 = vset.pattern.permute.xlu0 0
        %850 = vperm.xlu0 %849, %v838
        %v851 = vpop.permute.xlu0 %850
        %v853 = vmul.f32 %v779, %v846
        %v854 = vmul.f32 %v780, %v846
        %v855 = vmul.f32 %v781, %v851
        %v856 = vmul.f32 %v782, %v851
        %v857 = vmul.f32 %v783, %v846
        %v858 = vmul.f32 %v784, %v846
        %v859 = vmul.f32 %v785, %v851
        %v860 = vmul.f32 %v786, %v851
        %862 = vset.pattern.permute.xlu0 0
        %863 = vperm.xlu0 %862, %v841
        %v864 = vpop.permute.xlu0 %863
        %867 = vset.pattern.permute.xlu0 0
        %868 = vperm.xlu0 %867, %v842
        %v869 = vpop.permute.xlu0 %868
        %v871 = vadd.f32 %v853, %v864
        %v872 = vadd.f32 %v854, %v864
        %v873 = vadd.f32 %v855, %v869
        %v874 = vadd.f32 %v856, %v869
        %v875 = vadd.f32 %v857, %v864
        %v876 = vadd.f32 %v858, %v864
        %v877 = vadd.f32 %v859, %v869
        %v878 = vadd.f32 %v860, %v869
        %879 = vst [vmem:[%s342] sm:$0xff] %v871
        %880 = vst [vmem:[%s342 + $0x8] sm:$0xff] %v872
        %881 = vst [vmem:[%s342 + $0x10] sm:$0xff] %v873
        %882 = vst [vmem:[%s342 + $0x18] sm:$0xff] %v874
        %883 = vst [vmem:[%s342 + $0x20] sm:$0xff] %v875
        %884 = vst [vmem:[%s342 + $0x28] sm:$0xff] %v876
        %885 = vst [vmem:[%s342 + $0x30] sm:$0xff] %v877
        %886 = vst [vmem:[%s342 + $0x38] sm:$0xff] %v878
        %s887 = sand.u32 %s98, 1
        %s888 = scalar_lea.sflag [#allocation5], %s887
        %s889 = sand.u32 %s98, 1
        %s890 = smul.addr %s889, 64
        %s891 = scalar_lea.vmem [#allocation4], %s890
        // Predicated region
        $region94: #{tpu_custom_call.1} parent=84 // pred_check
          %p892 = pneg %p108
        $region95: #{tpu_custom_call.1} parent=84 // pred_check_branch
          %894 = sbr.rel (%p892) target = $region97
        $region96: #{tpu_custom_call.1} parent=84 // pred_region
          #allocation7 [shape = 'u32[6]{0}', space=smem, size = 0x18, scoped, tag = 'DMA stride descriptor']
          %s895 = smul.u32 2, %s17
          %s897 = ssub.s32 1024, 1024
          %898 = vsyncadd %s888, %s897
          %s899 = smul.addr %s895, 2
          %s900 = smul.addr %s899, 128
          %s901 = scalar_lea.hbm %s3, %s900
          %s903 = sshll.u32 1, 14
          %s904 = sxor.u32 4294967295, %s903
          %s907 = sshll.u32 7, 18
          %s908 = sxor.u32 4294967295, %s907
          %s909 = sand.u32 0, %s908
          %s911 = sor.u32 %s909, 0
          %s913 = sshll.u32 3, 24
          %s914 = sxor.u32 4294967295, %s913
          %s915 = sand.u32 %s911, %s914
          %s917 = sor.u32 %s915, 0
          %s918 = sshll.u32 %s891, 4
          %s919 = int_to_ptr.vmem [resolvable:$true] %s918
          %925 = sst [smem:[#allocation7]] 512
          %s926 = scalar_lea.smem [#allocation7], 1
          %927 = sst [smem:[%s926]] 1024
          %s928 = scalar_lea.smem [#allocation7], 2
          %929 = sst [smem:[%s928]] 2
          %s930 = scalar_lea.smem [#allocation7], 3
          %931 = sst [smem:[%s930]] 256
          %s932 = scalar_lea.smem [#allocation7], 4
          %933 = sst [smem:[%s932]] 256
          %s934 = scalar_lea.smem [#allocation7], 5
          %935 = sst [smem:[%s934]] 16
          %937 = dma.general %s919, 1024, %s901, %s888, [#allocation6], [#allocation7], %s917, 0
        $region97: #{tpu_custom_call.1} parent=84 // pred_fallthru
          _
      $region85: #{tpu_custom_call.1} parent=5 // pred_fallthru
        _
      %p938 = scmp.le.s32.totalorder 2, %s12
      // Predicated region
      $region98: #{tpu_custom_call.1} parent=5 // pred_check
        %p939 = pneg %p938
      $region99: #{tpu_custom_call.1} parent=5 // pred_check_branch
        %941 = sbr.rel (%p939) target = $region101
      $region100: #{tpu_custom_call.1} parent=5 // pred_region
        %s942 = ssub.s32 %s12, 2
        // Predicated region
        $region102: #{tpu_custom_call.1} parent=100 // pred_check
          %p943 = pneg %p114
        $region103: #{tpu_custom_call.1} parent=100 // pred_check_branch
          %945 = sbr.rel (%p943) target = $region105
        $region104: #{tpu_custom_call.1} parent=100 // pred_region
          %s946 = sand.u32 %s99, 1
          %s947 = scalar_lea.sflag [#allocation5], %s946
          %s948 = sand.u32 %s99, 1
          %s949 = smul.addr %s948, 64
          %s950 = scalar_lea.vmem [#allocation4], %s949
          %951 = dma.done %s947, 1024
        $region105: #{tpu_custom_call.1} parent=100 // pred_fallthru
          _
      $region101: #{tpu_custom_call.1} parent=5 // pred_fallthru
        _
    $region6: #{tpu_custom_call.1} parent=1 // loop_footer
      %s16 = sadd.s32 1, %s12
    $region7: #{tpu_custom_call.1} parent=1 // loop_footer_branch
      %11 = sbr.rel target = $region3
    $region8: #{tpu_custom_call.1} parent=1 // loop_exit
      _
    %952 = vsyncpa [#allocation5], 1
    %s953 = scalar_lea.sflag [#allocation5], 1
    %954 = vsyncpa %s953, 1

</llo_original>
